<compile_context>
chip_gen: v5e
topology: v5e:2x2
jax: 0.10.0
libtpu: 0.0.40
codegen_flags: <defaults>
</compile_context>

<pallas_src>
import functools
import math

import jax
import jax.numpy as jnp
from jax import lax
from jax.experimental import pallas as pl
from jax.experimental.pallas import tpu as pltpu

_EPS = 1e-5
_NEG_INF = -1e30


def _pick_config():
    """Generation-dependent VMEM budget and tile sizes."""
    vmem_phys = 64 * 1024 * 1024
    try:
        vmem_phys = int(pltpu.get_tpu_info().vmem_capacity_bytes)
    except Exception:
        pass
    if vmem_phys >= 100 * 1024 * 1024:          # v5e / v6e: 128 MiB physical VMEM
        return dict(vmem_limit=100 * 1024 * 1024, row_tile=512, col_tile=1024,
                    ff_tile=1024, q_tile=256)
    return dict(vmem_limit=48 * 1024 * 1024, row_tile=256, col_tile=512,
                ff_tile=512, q_tile=256)        # v7x: 64 MiB physical VMEM


_CFG = _pick_config()


def _mosaic_params(dims):
    return pltpu.CompilerParams(dimension_semantics=dims,
                                vmem_limit_bytes=_CFG["vmem_limit"])


def _row_tile(n, t):
    # largest power-of-two-ish divisor of n that is <= t (sublane dims: multiple of 8)
    if n <= t:
        return n
    while t >= 8:
        if n % t == 0:
            return t
        t //= 2
    return n


def _lane_tile(n, t):
    # lane dims must be a multiple of 128 or the full dim
    if n <= t:
        return n
    while t >= 128:
        if n % t == 0:
            return t
        t //= 2
    return n


# ----------------------------- LayerNorm helpers ------------------------------
def _layernorm_block(x, g, b, eps):
    mu = jnp.mean(x, axis=-1, keepdims=True)
    xc = x - mu
    var = jnp.mean(xc * xc, axis=-1, keepdims=True)
    return xc * lax.rsqrt(var + eps) * g + b


def _ln_kernel(x_ref, g_ref, b_ref, o_ref, *, eps):
    x = x_ref[...].astype(jnp.float32)
    o_ref[...] = _layernorm_block(x, g_ref[...], b_ref[...], eps).astype(o_ref.dtype)


def _ln_matmul_kernel(x_ref, g_ref, bt_ref, w_ref, b_ref, o_ref, *, eps):
    # LayerNorm (f32 stats) fused into a bf16 MXU projection (+ f32 bias).
    x = x_ref[...].astype(jnp.float32)
    z = _layernorm_block(x, g_ref[...], bt_ref[...], eps).astype(w_ref.dtype)
    y = jnp.dot(z, w_ref[...], preferred_element_type=jnp.float32) + b_ref[...]
    o_ref[...] = y.astype(o_ref.dtype)


def _matmul_res_kernel(x_ref, w_ref, b_ref, r_ref, o_ref):
    # bf16 matmul, f32 accumulate, fused bias + residual add.
    y = jnp.dot(x_ref[...], w_ref[...], preferred_element_type=jnp.float32)
    o_ref[...] = (y + b_ref[...] + r_ref[...].astype(jnp.float32)).astype(o_ref.dtype)


def _ln_ffn_kernel(x_ref, g_ref, bt_ref, w1_ref, b1_ref, w2_ref, b2_ref, o_ref,
                   z_sc, acc_sc, *, eps):
    # LayerNorm + (z@w1 + b1) -> ReLU -> (@w2) accumulated over d_ff tiles; the
    # [rows, d_ff] intermediate never touches HBM and never exceeds one tile.
    j = pl.program_id(1)

    @pl.when(j == 0)
    def _():
        x = x_ref[...].astype(jnp.float32)
        z_sc[...] = _layernorm_block(x, g_ref[...], bt_ref[...], eps).astype(z_sc.dtype)
        acc_sc[...] = jnp.zeros_like(acc_sc)

    h = jnp.dot(z_sc[...], w1_ref[...], preferred_element_type=jnp.float32) + b1_ref[...]
    h = jnp.maximum(h, 0.0).astype(w2_ref.dtype)
    acc_sc[...] += jnp.dot(h, w2_ref[...], preferred_element_type=jnp.float32)

    @pl.when(j == pl.num_programs(1) - 1)
    def _():
        o_ref[...] = (acc_sc[...] + b2_ref[...]
                      + x_ref[...].astype(jnp.float32)).astype(o_ref.dtype)


# ----------------------------- Tiled wrappers ---------------------------------
def layernorm(x, gamma, beta, eps=_EPS):
    shp = x.shape
    D = shp[-1]
    x2 = x.reshape(-1, D)
    N = x2.shape[0]
    tm = _row_tile(N, _CFG["row_tile"])
    out = pl.pallas_call(
        functools.partial(_ln_kernel, eps=eps),
        out_shape=jax.ShapeDtypeStruct((N, D), jnp.float32),
        grid=(pl.cdiv(N, tm),),
        in_specs=[
            pl.BlockSpec((tm, D), lambda i: (i, 0)),
            pl.BlockSpec((1, D), lambda i: (0, 0)),
            pl.BlockSpec((1, D), lambda i: (0, 0)),
        ],
        out_specs=pl.BlockSpec((tm, D), lambda i: (i, 0)),
        compiler_params=_mosaic_params(("parallel",)),
    )(x2, gamma.reshape(1, D), beta.reshape(1, D))
    return out.reshape(shp)


def ln_matmul(x2, gamma, beta, w, b, out_dtype=jnp.float32, eps=_EPS):
    N, Din = x2.shape
    Dout = w.shape[1]
    tm = _row_tile(N, _CFG["row_tile"])
    tn = _lane_tile(Dout, _CFG["col_tile"])
    return pl.pallas_call(
        functools.partial(_ln_matmul_kernel, eps=eps),
        out_shape=jax.ShapeDtypeStruct((N, Dout), out_dtype),
        grid=(N // tm, Dout // tn),
        in_specs=[
            pl.BlockSpec((tm, Din), lambda i, j: (i, 0)),
            pl.BlockSpec((1, Din), lambda i, j: (0, 0)),
            pl.BlockSpec((1, Din), lambda i, j: (0, 0)),
            pl.BlockSpec((Din, tn), lambda i, j: (0, j)),
            pl.BlockSpec((1, tn), lambda i, j: (0, j)),
        ],
        out_specs=pl.BlockSpec((tm, tn), lambda i, j: (i, j)),
        compiler_params=_mosaic_params(("parallel", "parallel")),
    )(x2, gamma.reshape(1, Din), beta.reshape(1, Din), w, b.reshape(1, Dout))


def matmul_residual(x2, w, b, res2):
    N, Din = x2.shape
    Dout = w.shape[1]
    tm = _row_tile(N, _CFG["row_tile"])
    tn = _lane_tile(Dout, _CFG["col_tile"])
    return pl.pallas_call(
        _matmul_res_kernel,
        out_shape=jax.ShapeDtypeStruct((N, Dout), jnp.float32),
        grid=(N // tm, Dout // tn),
        in_specs=[
            pl.BlockSpec((tm, Din), lambda i, j: (i, 0)),
            pl.BlockSpec((Din, tn), lambda i, j: (0, j)),
            pl.BlockSpec((1, tn), lambda i, j: (0, j)),
            pl.BlockSpec((tm, tn), lambda i, j: (i, j)),
        ],
        out_specs=pl.BlockSpec((tm, tn), lambda i, j: (i, j)),
        compiler_params=_mosaic_params(("parallel", "parallel")),
    )(x2, w, b.reshape(1, Dout), res2)


def ln_ffn_residual(x2, gamma, beta, w1, b1, w2, b2, eps=_EPS):
    N, D = x2.shape
    Dff = w1.shape[1]
    tm = _row_tile(N, _CFG["row_tile"])
    tff = _lane_tile(Dff, _CFG["ff_tile"])
    return pl.pallas_call(
        functools.partial(_ln_ffn_kernel, eps=eps),
        out_shape=jax.ShapeDtypeStruct((N, D), jnp.float32),
        grid=(N // tm, Dff // tff),
        in_specs=[
            pl.BlockSpec((tm, D), lambda i, j: (i, 0)),
            pl.BlockSpec((1, D), lambda i, j: (0, 0)),
            pl.BlockSpec((1, D), lambda i, j: (0, 0)),
            pl.BlockSpec((D, tff), lambda i, j: (0, j)),
            pl.BlockSpec((1, tff), lambda i, j: (0, j)),
            pl.BlockSpec((tff, D), lambda i, j: (j, 0)),
            pl.BlockSpec((1, D), lambda i, j: (0, 0)),
        ],
        out_specs=pl.BlockSpec((tm, D), lambda i, j: (i, 0)),
        scratch_shapes=[pltpu.VMEM((tm, D), w1.dtype),
                        pltpu.VMEM((tm, D), jnp.float32)],
        compiler_params=_mosaic_params(("parallel", "arbitrary")),
    )(x2, gamma.reshape(1, D), beta.reshape(1, D),
      w1, b1.reshape(1, Dff), w2, b2.reshape(1, D))


# ----------------- Relative multi-head attention core kernel -----------------
def _rel_attn_kernel(q_ref, kv_ref, u_ref, kpe_ref, kpb_ref, mask_ref, o_ref,
                     *, scale, seq_len, key_len, heads, q_tile):
    # q_ref: [tq, H, dk] bf16   kv_ref: [K, 2, H, dk] bf16
    # u_ref: [H, dk] bf16       kpe_ref: [Lp, H, dk] bf16 (L padded to 128-multiple)
    # kpb_ref: [H, Lp] f32      mask_ref: [tq, K] f32 additive (0 / -1e30)
    # o_ref: [tq, H*dk] lane-dense output
    si = pl.program_id(1)
    Lp = kpe_ref.shape[0]
    mask_add = mask_ref[...]

    # per-row left-rotate amount for the relative shift: S - absolute_query_index
    row = lax.broadcasted_iota(jnp.int32, (q_tile, 1), 0)
    shift = seq_len - (si * q_tile + row)            # in [1, seq_len]

    q = q_ref[...]
    kv = kv_ref[...]
    u = u_ref[...]
    kpe = kpe_ref[...]
    kpb = kpb_ref[...]

    outs = []
    for h in range(heads):
        qh = q[:, h, :]                              # [tq, dk]  bf16
        kh = kv[:, 0, h, :]                          # [K, dk]   bf16
        vh = kv[:, 1, h, :]                          # [K, dk]   bf16
        uh = u[h:h + 1, :]                           # [1, dk]

        # content term (q + u) . k^T
        ac = lax.dot_general(qh + uh, kh, (((1,), (1,)), ((), ())),
                             preferred_element_type=jnp.float32)        # [tq, K]
        # positional term over relative offsets
        bmat = lax.dot_general(qh, kpe[:, h, :], (((1,), (1,)), ((), ())),
                               preferred_element_type=jnp.float32)      # [tq, Lp]
        bmat = bmat + kpb[h:h + 1, :]

        # relative shift: bd[r, k] = bmat[r, k + seq_len - i_abs(r)] (no wrap needed
        # for k < key_len).  log2(seq_len) static XLU rotations + per-row bit select.
        cur = bmat
        c = 1
        while c <= seq_len:
            # left-rotate by c lanes: out[:, j] = cur[:, (j + c) % Lp]
            rolled = pltpu.roll(cur, shift=Lp - c, axis=1)
            cur = jnp.where((shift & c) != 0, rolled, cur)
            c <<= 1
        bd = cur[:, :key_len]

        scores = (ac + bd) * scale + mask_add
        m = jnp.max(scores, axis=-1, keepdims=True)
        e = jnp.exp(scores - m)
        denom = jnp.sum(e, axis=-1, keepdims=True)
        p = (e / denom).astype(vh.dtype)             # bf16 probs feed the MXU
        outs.append(jnp.dot(p, vh, preferred_element_type=jnp.float32))  # [tq, dk]

    o_ref[...] = jnp.concatenate(outs, axis=-1).astype(o_ref.dtype)


def rel_attention_core(q3, kv5, u, kpe, kpb, mask_add, scale):
    # q3:[S,B,H,dk]  kv5:[K,B,2,H,dk]  u:[H,dk]  kpe:[Lp,H,dk]  kpb:[H,Lp]
    # mask_add:[Bm,S,K]  ->  out [S,B,D] bf16 (lane-dense, ready for the out-projection)
    S, B, H, dk = q3.shape
    K = kv5.shape[0]
    Lp = kpe.shape[0]
    Bm = mask_add.shape[0]
    D = H * dk

    tq = min(S, _CFG["q_tile"])
    if S % tq != 0:
        tq = S
    n_sq = S // tq

    mask_idx = (lambda b, si: (b, si, 0)) if Bm == B else (lambda b, si: (0, si, 0))
    kern = functools.partial(_rel_attn_kernel, scale=scale, seq_len=S,
                             key_len=K, heads=H, q_tile=tq)
    return pl.pallas_call(
        kern,
        out_shape=jax.ShapeDtypeStruct((S, B, D), jnp.bfloat16),
        grid=(B, n_sq),
        in_specs=[
            pl.BlockSpec((tq, None, H, dk), lambda b, si: (si, b, 0, 0)),
            pl.BlockSpec((K, None, 2, H, dk), lambda b, si: (0, b, 0, 0, 0)),
            pl.BlockSpec((H, dk), lambda b, si: (0, 0)),
            pl.BlockSpec((Lp, H, dk), lambda b, si: (0, 0, 0)),
            pl.BlockSpec((H, Lp), lambda b, si: (0, 0)),
            pl.BlockSpec((None, tq, K), mask_idx),
        ],
        out_specs=pl.BlockSpec((tq, None, D), lambda b, si: (si, b, 0)),
        compiler_params=_mosaic_params(("parallel", "parallel")),
    )(q3, kv5, u, kpe, kpb, mask_add)


# ----------------------------- Model glue ------------------------------------
def rel_multihead_attention(p, x, m_raw, mask_add):
    # x: [S,B,D] (pre-norm); m_raw: [K,B,D] (pre-norm mem++x); mask_add: [Bm,S,K]
    S, B, D = x.shape
    Kl = m_raw.shape[0]
    H, dk = p["heads"], p["d_k"]
    scale = 1.0 / math.sqrt(dk)

    # LayerNorm fused into the projections; K and V share one fused [D, 2D] matmul.
    q = ln_matmul(x.reshape(S * B, D), p["ln1_g"], p["ln1_b"], p["wq"], p["bq"],
                  out_dtype=jnp.bfloat16)
    kv = ln_matmul(m_raw.reshape(Kl * B, D), p["ln1_g"], p["ln1_b"], p["wkv"], p["bkv"],
                   out_dtype=jnp.bfloat16)

    # Metadata-only reshapes -- no HBM transpose passes feeding the attention kernel.
    q3 = q.reshape(S, B, H, dk)
    kv5 = kv.reshape(Kl, B, 2, H, dk)

    P = p["P"]
    L = Kl + S
    Lp = ((L + 127) // 128) * 128
    kpe = p["key_pos_emb"][P - Kl: P + S]                         # [L, H, dk] bf16
    kpe = jnp.pad(kpe, ((0, Lp - L), (0, 0), (0, 0)))             # pad rel axis to 128x
    kpb = p["key_pos_bias"][P - Kl: P + S]                        # [L, H] f32
    kpb = jnp.transpose(jnp.pad(kpb, ((0, Lp - L), (0, 0))))      # [H, Lp]
    u = p["query_pos_bias"]                                       # [H, dk] bf16

    attn = rel_attention_core(q3, kv5, u, kpe, kpb, mask_add, scale)   # [S,B,D] bf16

    # output projection fused with the residual add (residual is the raw x, kept f32)
    out = matmul_residual(attn.reshape(S * B, D), p["wo"], p["bo"], x.reshape(S * B, D))
    return out.reshape(S, B, D)


def transformer_xl_layer(x, mem, mask_add, p):
    # dropout is a no-op in inference mode
    S, B, D = x.shape
    m_raw = jnp.concatenate([mem, x], axis=0) if mem is not None else x
    x = rel_multihead_attention(p, x, m_raw, mask_add)
    x = ln_ffn_residual(x.reshape(S * B, D), p["ln2_g"], p["ln2_b"],
                        p["w1"], p["b1"], p["w2"], p["b2"]).reshape(S, B, D)
    return x


def transformer_xl_forward(x, mems, mask, layer_params, norm_g, norm_b):
    # additive mask precomputed once (0 where visible, -1e30 where masked)
    mask_add = jnp.where(jnp.transpose(mask, (2, 0, 1)) != 0, 0.0, _NEG_INF
                         ).astype(jnp.float32)
    new_mem = []
    for i, p in enumerate(layer_params):
        new_mem.append(x)  # TODO(synk): torch uses x.detach(); no autograd here, plain copy.
        m = mems[i] if mems else None
        x = transformer_xl_layer(x, m, mask_add, p)
    return layernorm(x, norm_g, norm_b), new_mem


# ----------------------------- Parameter init --------------------------------
def init_layer_params(key, d_model, heads, d_ff):
    d_k = d_model // heads
    P = 2 ** 12
    ks = jax.random.split(key, 10)
    s = 0.05

    def w(k, shape, dtype=jnp.bfloat16):
        return (jax.random.normal(k, shape, jnp.float32) * s).astype(dtype)

    wk = w(ks[1], (d_model, d_model))
    wv = w(ks[2], (d_model, d_model))
    bv = jax.random.normal(ks[3], (d_model,), jnp.float32) * s
    return dict(
        heads=heads, d_k=d_k, P=P,
        ln1_g=jnp.ones((d_model,), jnp.float32), ln1_b=jnp.zeros((d_model,), jnp.float32),
        ln2_g=jnp.ones((d_model,), jnp.float32), ln2_b=jnp.zeros((d_model,), jnp.float32),
        # bf16 weights (MXU-native), f32 biases (added after the f32 accumulate)
        wq=w(ks[0], (d_model, d_model)), bq=jnp.zeros((d_model,), jnp.float32),
        # K and V projections fused into one [D, 2D] matmul (K/Q have no bias in labml).
        wkv=jnp.concatenate([wk, wv], axis=1),
        bkv=jnp.concatenate([jnp.zeros((d_model,), jnp.float32), bv], axis=0),
        wo=w(ks[4], (d_model, d_model)), bo=jnp.zeros((d_model,), jnp.float32),
        # labml inits these to zeros; use small random values so the relative term is exercised
        key_pos_emb=w(ks[5], (2 * P, heads, d_k)),
        key_pos_bias=jax.random.normal(ks[6], (2 * P, heads), jnp.float32) * s,
        query_pos_bias=w(ks[7], (heads, d_k)),
        w1=w(ks[8], (d_model, d_ff)), b1=jnp.zeros((d_ff,), jnp.float32),
        w2=w(ks[9], (d_ff, d_model)), b2=jnp.zeros((d_model,), jnp.float32),
    )


# ----------------------------- Main ------------------------------------------
if __name__ == "__main__":
    S, M, B, D, H, FF, NL = 8, 8, 2, 32, 4, 64, 2
    K = M + S

    key = jax.random.PRNGKey(0)
    kx, km, kp = jax.random.split(key, 3)

    x = jax.random.normal(kx, (S, B, D), jnp.float32)
    mems = [jax.random.normal(jax.random.fold_in(km, i), (M, B, D), jnp.float32)
            for i in range(NL)]

    # mask[i, j, 0] = True if query i (absolute pos M+i) may attend to key j
    i_idx = jnp.arange(S)[:, None]
    j_idx = jnp.arange(K)[None, :]
    mask = (j_idx <= i_idx + M)[:, :, None]                       # [S, K, 1] bool

    layer_keys = jax.random.split(kp, NL)
    layer_params = [init_layer_params(layer_keys[i], D, H, FF) for i in range(NL)]
    norm_g = jnp.ones((D,), jnp.float32)
    norm_b = jnp.zeros((D,), jnp.float32)

    out, new_mem = transformer_xl_forward(x, mems, mask, layer_params, norm_g, norm_b)
    jax.block_until_ready(out)
    jax.block_until_ready(new_mem)
    assert out.shape == (S, B, D) and len(new_mem) == NL
    assert bool(jnp.all(jnp.isfinite(out)))
    print("KERNEL_OK")
</pallas_src>

<mosaic_0001>
module attributes {stable_mosaic.version = 11 : i64} {
  func.func @_ln_matmul_kernel(%arg0: i32, %arg1: i32, %arg2: memref<16x32xf32, #tpu.memory_space<vmem>>, %arg3: memref<1x32xf32, #tpu.memory_space<vmem>>, %arg4: memref<1x32xf32, #tpu.memory_space<vmem>>, %arg5: memref<32x32xbf16, #tpu.memory_space<vmem>>, %arg6: memref<1x32xf32, #tpu.memory_space<vmem>>, %arg7: memref<16x32xbf16, #tpu.memory_space<vmem>>) attributes {dimension_semantics = [#tpu.dimension_semantics<parallel>, #tpu.dimension_semantics<parallel>], iteration_bounds = array<i64: 1, 1>, scalar_prefetch = 0 : i64, scratch_operands = 0 : i64, tpu.core_type = #tpu.core_type<tc>, window_params = [{transform_indices = @transform_0, window_bounds = array<i64: 16, 32>}, {pipeline_mode = #tpu.pipeline_mode<synchronous>, transform_indices = @transform_1, window_bounds = array<i64: 1, 32>}, {pipeline_mode = #tpu.pipeline_mode<synchronous>, transform_indices = @transform_2, window_bounds = array<i64: 1, 32>}, {transform_indices = @transform_3, window_bounds = array<i64: 32, 32>}, {transform_indices = @transform_4, window_bounds = array<i64: 1, 32>}, {transform_indices = @transform_5, window_bounds = array<i64: 16, 32>}]} {
    %c0 = arith.constant 0 : index
    %c0_0 = arith.constant 0 : index
    %0 = vector.load %arg2[%c0, %c0_0] : memref<16x32xf32, #tpu.memory_space<vmem>>, vector<16x32xf32>
    %c0_1 = arith.constant 0 : index
    %c0_2 = arith.constant 0 : index
    %1 = vector.load %arg3[%c0_1, %c0_2] : memref<1x32xf32, #tpu.memory_space<vmem>>, vector<1x32xf32>
    %c0_3 = arith.constant 0 : index
    %c0_4 = arith.constant 0 : index
    %2 = vector.load %arg4[%c0_3, %c0_4] : memref<1x32xf32, #tpu.memory_space<vmem>>, vector<1x32xf32>
    %cst = arith.constant dense<0.000000e+00> : vector<16xf32>
    %3 = vector.multi_reduction <add>, %0, %cst [1] : vector<16x32xf32> to vector<16xf32>
    %4 = vector.shape_cast %3 : vector<16xf32> to vector<16x1xf32>
    %cst_5 = arith.constant 3.200000e+01 : f32
    %5 = vector.broadcast %cst_5 : f32 to vector<16x1xf32>
    %6 = arith.divf %4, %5 : vector<16x1xf32>
    %7 = vector.broadcast %6 : vector<16x1xf32> to vector<16x32xf32>
    %8 = arith.subf %0, %7 : vector<16x32xf32>
    %9 = arith.mulf %8, %8 : vector<16x32xf32>
    %cst_6 = arith.constant dense<0.000000e+00> : vector<16xf32>
    %10 = vector.multi_reduction <add>, %9, %cst_6 [1] : vector<16x32xf32> to vector<16xf32>
    %11 = vector.shape_cast %10 : vector<16xf32> to vector<16x1xf32>
    %cst_7 = arith.constant 3.200000e+01 : f32
    %12 = vector.broadcast %cst_7 : f32 to vector<16x1xf32>
    %13 = arith.divf %11, %12 : vector<16x1xf32>
    %cst_8 = arith.constant 9.99999974E-6 : f32
    %14 = vector.broadcast %cst_8 : f32 to vector<16x1xf32>
    %15 = arith.addf %13, %14 : vector<16x1xf32>
    %16 = math.rsqrt %15 : vector<16x1xf32>
    %17 = vector.broadcast %16 : vector<16x1xf32> to vector<16x32xf32>
    %18 = arith.mulf %8, %17 : vector<16x32xf32>
    %19 = vector.broadcast %1 : vector<1x32xf32> to vector<16x32xf32>
    %20 = arith.mulf %18, %19 : vector<16x32xf32>
    %21 = vector.broadcast %2 : vector<1x32xf32> to vector<16x32xf32>
    %22 = arith.addf %20, %21 : vector<16x32xf32>
    %23 = arith.truncf %22 : vector<16x32xf32> to vector<16x32xbf16>
    %c0_9 = arith.constant 0 : index
    %c0_10 = arith.constant 0 : index
    %24 = vector.load %arg5[%c0_9, %c0_10] : memref<32x32xbf16, #tpu.memory_space<vmem>>, vector<32x32xbf16>
    %cst_11 = arith.constant dense<0.000000e+00> : vector<16x32xf32>
    %25 = tpu.matmul %23, %24, %cst_11 {dimension_numbers = #tpu.dot_dimension_numbers<[1], [0], [0], [1], [0, 0, 1, 1], [], []>} : vector<16x32xbf16>, vector<32x32xbf16>, vector<16x32xf32> -> vector<16x32xf32>
    %c0_12 = arith.constant 0 : index
    %c0_13 = arith.constant 0 : index
    %26 = vector.load %arg6[%c0_12, %c0_13] : memref<1x32xf32, #tpu.memory_space<vmem>>, vector<1x32xf32>
    %27 = vector.broadcast %26 : vector<1x32xf32> to vector<16x32xf32>
    %28 = arith.addf %25, %27 : vector<16x32xf32>
    %29 = arith.truncf %28 : vector<16x32xf32> to vector<16x32xbf16>
    %c0_14 = arith.constant 0 : index
    %c0_15 = arith.constant 0 : index
    %30 = vector.load %arg7[%c0_14, %c0_15] : memref<16x32xbf16, #tpu.memory_space<vmem>>, vector<16x32xbf16>
    tpu.vector_store %arg7[%c0_14, %c0_15], %29 {strides = array<i32>} : memref<16x32xbf16, #tpu.memory_space<vmem>>, vector<16x32xbf16>,
    return
  }
  func.func @transform_0(%arg0: i32, %arg1: i32) -> (i32, i32) {
    %c0_i32 = arith.constant 0 : i32
    %c0_i32_0 = arith.constant 0 : i32
    return %arg0, %c0_i32 : i32, i32
  }
  func.func @transform_1(%arg0: i32, %arg1: i32) -> (i32, i32) {
    %c0_i32 = arith.constant 0 : i32
    %c0_i32_0 = arith.constant 0 : i32
    %c0_i32_1 = arith.constant 0 : i32
    return %c0_i32, %c0_i32_0 : i32, i32
  }
  func.func @transform_2(%arg0: i32, %arg1: i32) -> (i32, i32) {
    %c0_i32 = arith.constant 0 : i32
    %c0_i32_0 = arith.constant 0 : i32
    %c0_i32_1 = arith.constant 0 : i32
    return %c0_i32, %c0_i32_0 : i32, i32
  }
  func.func @transform_3(%arg0: i32, %arg1: i32) -> (i32, i32) {
    %c0_i32 = arith.constant 0 : i32
    %c0_i32_0 = arith.constant 0 : i32
    return %c0_i32, %arg1 : i32, i32
  }
  func.func @transform_4(%arg0: i32, %arg1: i32) -> (i32, i32) {
    %c0_i32 = arith.constant 0 : i32
    %c0_i32_0 = arith.constant 0 : i32
    return %c0_i32, %arg1 : i32, i32
  }
  func.func @transform_5(%arg0: i32, %arg1: i32) -> (i32, i32) {
    %c0_i32 = arith.constant 0 : i32
    return %arg0, %arg1 : i32, i32
  }
}

</mosaic_0001>

<llo_original>
// kernel: tpu_custom_call.1
$region0: #{tpu_custom_call.1}
  #allocation0 [shape = 'u32[]', space=smem, size = 0x4, offset = 0x4, fixed_abs, tag = 'smem constant byte address 0x4 - core index']
  #allocation1 [shape = 'u32[72,128]{1,0:T(1,128)}', space=vmem, size = 0x9000, scoped, tag = 'internal scratch']
  %s0 = inlined_call_operand.hbm [shape: f32[16,32], index: 0, kind: input, shape index: {}]
  %s1 = inlined_call_operand.hbm [shape: f32[1,32], index: 1, kind: input, shape index: {}]
  %s2 = inlined_call_operand.vmem [shape: f32[1,32], index: 2, kind: input, shape index: {}]
  %s3 = inlined_call_operand.hbm [shape: bf16[32,32], index: 3, kind: input, shape index: {}]
  %s4 = inlined_call_operand.vmem [shape: f32[1,32], index: 4, kind: input, shape index: {}]
  %s5 = inlined_call_operand.hbm [shape: bf16[16,32], index: 5, kind: output, shape index: {}]
  %s6 = sld [smem:[#allocation0]]
  $region42: #{tpu_custom_call.1} parent=0
    _
  %s8 = ssub.s32 1, %s6
  %s9 = scalar_select 0, %s8, %s6
  $region1: #{tpu_custom_call.1} parent=0
    #allocation2 [shape = 'u8[8192]{0}', space=vmem, size = 0x2000, scoped, tag = 'input window, operand 0, single buffered']
    #allocation3 [shape = 's32[1]{0}', space=sflag, size = 0x4, scoped, tag = 'scoped memory for tpu_custom_call.1']
    #allocation4 [shape = 's32[1]{0}', space=sflag, size = 0x4, scoped, tag = 'scoped memory for tpu_custom_call.1']
    #allocation5 [shape = 'u8[512]{0}', space=vmem, size = 0x400, scoped, tag = 'input window, operand 1, single buffered']
    #allocation6 [shape = 's32[1]{0}', space=sflag, size = 0x4, scoped, tag = 'scoped memory for tpu_custom_call.1']
    #allocation7 [shape = 'u8[8192]{0}', space=vmem, size = 0x2000, scoped, tag = 'input window, operand 3, single buffered']
    #allocation8 [shape = 'u8[4096]{0}', space=vmem, size = 0x1000, scoped, tag = 'output window, operand 0, single buffered']
    %10 = vsyncpa [#allocation3], 0
    %11 = vsyncpa [#allocation6], 0
    %12 = vsyncpa [#allocation4], 0
    // Predicated region
    $region2: #{tpu_custom_call.1} parent=1 // pred_check
      _
    $region3: #{tpu_custom_call.1} parent=1 // pred_check_branch
      %14 = sbr.rel (0) target = $region5
    $region4: #{tpu_custom_call.1} parent=1 // pred_region
      %16 = vsyncadd [#allocation3], 0
      %s17 = sshll.u32 %s0, 4
      %s18 = int_to_ptr.hbm [resolvable:$true] %s17
      %s19 = sshll.u32 [#allocation2], 4
      %s20 = int_to_ptr.vmem [resolvable:$true] %s19
      %25 = dma.hbm_to_vmem [thread:$0]  %s18, 256, %s20, [#allocation3], 128, 128, 8
    $region5: #{tpu_custom_call.1} parent=1 // pred_fallthru
      _
    // Predicated region
    $region6: #{tpu_custom_call.1} parent=1 // pred_check
      _
    $region7: #{tpu_custom_call.1} parent=1 // pred_check_branch
      %27 = sbr.rel (0) target = $region9
    $region8: #{tpu_custom_call.1} parent=1 // pred_region
      %29 = vsyncadd [#allocation6], 0
      %s31 = sshll.u32 %s1, 4
      %s32 = int_to_ptr.hbm [resolvable:$true] %s31
      %s33 = sshll.u32 [#allocation5], 4
      %s34 = int_to_ptr.vmem [resolvable:$true] %s33
      %36 = dma.hbm_to_vmem [thread:$0]  %s32, 16, %s34, [#allocation6]
    $region9: #{tpu_custom_call.1} parent=1 // pred_fallthru
      _
    // Predicated region
    $region10: #{tpu_custom_call.1} parent=1 // pred_check
      _
    $region11: #{tpu_custom_call.1} parent=1 // pred_check_branch
      %38 = sbr.rel (0) target = $region13
    $region12: #{tpu_custom_call.1} parent=1 // pred_region
      _
    $region13: #{tpu_custom_call.1} parent=1 // pred_fallthru
      _
    // Predicated region
    $region14: #{tpu_custom_call.1} parent=1 // pred_check
      _
    $region15: #{tpu_custom_call.1} parent=1 // pred_check_branch
      %40 = sbr.rel (0) target = $region17
    $region16: #{tpu_custom_call.1} parent=1 // pred_region
      %42 = vsyncadd [#allocation6], 0
      %s43 = sshll.u32 %s3, 4
      %s44 = int_to_ptr.hbm [resolvable:$true] %s43
      %s45 = sshll.u32 [#allocation7], 4
      %s46 = int_to_ptr.vmem [resolvable:$true] %s45
      %51 = dma.hbm_to_vmem [thread:$0]  %s44, 256, %s46, [#allocation6], 64, 64, 4
    $region17: #{tpu_custom_call.1} parent=1 // pred_fallthru
      _
    // Predicated region
    $region18: #{tpu_custom_call.1} parent=1 // pred_check
      _
    $region19: #{tpu_custom_call.1} parent=1 // pred_check_branch
      %53 = sbr.rel (0) target = $region21
    $region20: #{tpu_custom_call.1} parent=1 // pred_region
      _
    $region21: #{tpu_custom_call.1} parent=1 // pred_fallthru
      _
    // Predicated region
    $region22: #{tpu_custom_call.1} parent=1 // pred_check
      _
    $region23: #{tpu_custom_call.1} parent=1 // pred_check_branch
      %55 = sbr.rel (0) target = $region25
    $region24: #{tpu_custom_call.1} parent=1 // pred_region
      %57 = dma.done [#allocation3], 256
    $region25: #{tpu_custom_call.1} parent=1 // pred_fallthru
      _
    // Predicated region
    $region26: #{tpu_custom_call.1} parent=1 // pred_check
      _
    $region27: #{tpu_custom_call.1} parent=1 // pred_check_branch
      %59 = sbr.rel (0) target = $region29
    $region28: #{tpu_custom_call.1} parent=1 // pred_region
      %61 = dma.done [#allocation6], 16
    $region29: #{tpu_custom_call.1} parent=1 // pred_fallthru
      _
    // Predicated region
    $region30: #{tpu_custom_call.1} parent=1 // pred_check
      _
    $region31: #{tpu_custom_call.1} parent=1 // pred_check_branch
      %63 = sbr.rel (0) target = $region33
    $region32: #{tpu_custom_call.1} parent=1 // pred_region
      %65 = dma.done [#allocation6], 256
    $region33: #{tpu_custom_call.1} parent=1 // pred_fallthru
      _
    %v67 = vld [vmem:[#allocation2] sm:$0xff]
    %v68 = vld [vmem:[#allocation2 + $0x8] sm:$0xff]
    %v69 = vld [vmem:[#allocation5] sm:$0x1]
    %v70 = vld [vmem:[%s2] sm:$0x1]
    %vm71 = vcmask 261120
    %v72 = vsel %vm71, %v67, 0.0
    %73 = vadd.xlane.f32.xlu0 %v72
    %v74 = vpop.xlane.xlu0 %73
    %v75 = vsel %vm71, %v68, 0.0
    %76 = vadd.xlane.f32.xlu0 %v75
    %v77 = vpop.xlane.xlu0 %76
    %v78 = vrcp.pop 32.0
    %v79 = vmul.f32 32.0, %v78
    %v80 = vsub.f32 1.0, %v79
    %v81 = vmul.f32 %v78, %v80
    %v82 = vadd.f32 %v78, %v81
    %vm83 = vweird.f32 %v78
    %v84 = vsel %vm83, %v78, %v82
    %v85 = vmul.f32 %v74, %v84
    %v86 = vmul.f32 %v77, %v84
    %v87 = vsub.f32 %v67, %v85
    %v88 = vsub.f32 %v68, %v86
    %v89 = vmul.f32 %v87, %v87
    %v90 = vmul.f32 %v88, %v88
    %v91 = vsel %vm71, %v89, 0.0
    %92 = vadd.xlane.f32.xlu0 %v91
    %v93 = vpop.xlane.xlu0 %92
    %v94 = vsel %vm71, %v90, 0.0
    %95 = vadd.xlane.f32.xlu0 %v94
    %v96 = vpop.xlane.xlu0 %95
    %v97 = vmul.f32 %v93, %v84
    %v98 = vmul.f32 %v96, %v84
    %v99 = vadd.f32 %v97, 1e-05
    %v100 = vadd.f32 %v98, 1e-05
    %v101 = vrsqrt.pop %v99
    %v102 = vmul.f32 %v101, %v99
    %v103 = vmul.f32 %v102, %v101
    %v104 = vmul.f32 0.5, %v103
    %v105 = vsub.f32 1.5, %v104
    %v106 = vmul.f32 %v101, %v105
    %vm107 = vweird.f32 %v99
    %vm108 = vweird.f32 %v101
    %vm109 = vmor %vm107, %vm108
    %v110 = vsel %vm109, %v101, %v106
    %v111 = vrsqrt.pop %v100
    %v112 = vmul.f32 %v111, %v100
    %v113 = vmul.f32 %v112, %v111
    %v114 = vmul.f32 0.5, %v113
    %v115 = vsub.f32 1.5, %v114
    %v116 = vmul.f32 %v111, %v115
    %vm117 = vweird.f32 %v100
    %vm118 = vweird.f32 %v111
    %vm119 = vmor %vm117, %vm118
    %v120 = vsel %vm119, %v111, %v116
    %v121 = vmul.f32 %v87, %v110
    %v122 = vmul.f32 %v88, %v120
    %v124 = vperm.slane %v69, 0
    %v126 = vmul.f32 %v121, %v124
    %v127 = vmul.f32 %v122, %v124
    %v129 = vperm.slane %v70, 0
    %v131 = vadd.f32 %v126, %v129
    %v132 = vadd.f32 %v127, %v129
    %v133 = vpack.c.bf16 %v132, %v131
    %v134 = vld [vmem:[#allocation7] sm:$0xf]
    %v135 = vld [vmem:[#allocation7 + $0x4] sm:$0xf]
    %v136 = vld [vmem:[#allocation7 + $0x8] sm:$0xf]
    %v137 = vld [vmem:[#allocation7 + $0xc] sm:$0xf]
    %v138 = vld [vmem:[%s4] sm:$0x1]
    %v140 = vperm.slane %v138, 0
    %v146 = vunpack.c.l.b16 %v134
    %v147 = vunpack.c.l.b16 %v135
    %v148 = vunpack.c.l.b16 %v136
    %v149 = vunpack.c.l.b16 %v137
    %v150 = vpack.c.b16 %v147, %v146
    %v151 = vpack.c.b16 %v149, %v148
    %v155 = vsel %vm71, %v133, 0
    %157 = vmatpush.bf16.msra.mxu0 0
    %158 = vmatpush.bf16.msra.mxu0 0
    %159 = vmatpush.bf16.msra.mxu0 0
    %160 = vmatpush.bf16.msra.mxu0 0
    %161 = vmatpush.bf16.msra.mxu0 0
    %162 = vmatpush.bf16.msra.mxu0 0
    %163 = vmatpush.bf16.msra.mxu0 %v151
    %164 = vmatpush.bf16.msra.mxu0 %v150
    %165 = vmatmul.bf16.gmra.mxu0 %v155
    %v166 = vpop.f32.mrf.mxu0
    %v167 = vadd.f32 %v140, %v166
    %v168 = vpop.f32.mrf.mxu0
    %v169 = vadd.f32 %v140, %v168
    %170 = vdwg.mxu0
    %v171 = vpack.c.bf16 %v167, %v167
    %v172 = vpack.c.bf16 %v169, %v169
    %vm173 = vcmask 257024
    %174 = vst.msk [vmem:[#allocation8] sm:$0xf] %vm173, %v171
    %175 = vst.msk [vmem:[#allocation8 + $0x4] sm:$0xf] %vm173, %v172
    // Predicated region
    $region34: #{tpu_custom_call.1} parent=1 // pred_check
      _
    $region35: #{tpu_custom_call.1} parent=1 // pred_check_branch
      %177 = sbr.rel (0) target = $region37
    $region36: #{tpu_custom_call.1} parent=1 // pred_region
      %179 = vsyncadd [#allocation4], 0
      %s180 = sshll.u32 [#allocation8], 4
      %s181 = int_to_ptr.vmem [resolvable:$true] %s180
      %s182 = sshll.u32 %s5, 4
      %s183 = int_to_ptr.hbm [resolvable:$true] %s182
      %188 = dma.vmem_to_hbm [thread:$0]  %s181, 128, %s183, [#allocation4], 64, 64, 4
    $region37: #{tpu_custom_call.1} parent=1 // pred_fallthru
      _
    // Predicated region
    $region38: #{tpu_custom_call.1} parent=1 // pred_check
      _
    $region39: #{tpu_custom_call.1} parent=1 // pred_check_branch
      %190 = sbr.rel (0) target = $region41
    $region40: #{tpu_custom_call.1} parent=1 // pred_region
      %192 = dma.done [#allocation4], 128
    $region41: #{tpu_custom_call.1} parent=1 // pred_fallthru
      _
    %193 = vsyncpa [#allocation3], 1
    %194 = vsyncpa [#allocation6], 1
    %195 = vsyncpa [#allocation4], 1

</llo_original>
